<compile_context>
chip_gen: v5e
topology: v5e:2x2
jax: 0.10.0
libtpu: 0.0.40
codegen_flags: <defaults>
</compile_context>

<pallas_src>
import functools

import jax
import jax.numpy as jnp
from jax.experimental import pallas as pl
from jax.experimental.pallas import tpu as pltpu


def _focal_loss_kernel(x_ref, t_ref, o_ref, acc_ref, *, gamma: float, inv_n: float):
    # x_ref:   [tile_n, C] float input tile
    # t_ref:   [tile_n, 1] int32 targets (-1 marks padded rows)
    # o_ref:   [1, 1] f32 output (resident across the grid)
    # acc_ref: [tile_n, 1] f32 scratch (per-row focal-term accumulator)
    i = pl.program_id(0)

    @pl.when(i == 0)
    def _():
        acc_ref[...] = jnp.zeros_like(acc_ref)

    x = x_ref[...].astype(jnp.float32)          # upcast (bf16 inputs welcome)
    t = t_ref[...]                              # [tile_n, 1] int32

    # Numerically-stable log-softmax pieces along the class (lane) axis.
    m = jnp.max(x, axis=1, keepdims=True)                            # [tile_n, 1]
    shifted = x - m                                                  # [tile_n, C]
    lse = jnp.log(jnp.sum(jnp.exp(shifted), axis=1, keepdims=True))  # [tile_n, 1]

    # Gather shifted[n, target[n]] with a one-hot lane mask (no dynamic gather).
    lane_ids = jax.lax.broadcasted_iota(jnp.int32, x.shape, dimension=1)
    mask = lane_ids == t                                             # [tile_n, C]
    shifted_t = jnp.sum(jnp.where(mask, shifted, 0.0), axis=1, keepdims=True)

    # Focal term only on the picked column ([tile_n, 1]).
    logpt_t = shifted_t - lse
    pt_t = jnp.exp(logpt_t)
    w = 1.0 - pt_t
    if float(gamma).is_integer() and gamma >= 0:
        fw = jnp.ones_like(w)
        for _ in range(int(gamma)):               # gamma=2 -> two VPU multiplies
            fw = fw * w
    else:
        fw = w ** gamma                           # fallback for non-integer gamma
    focal_t = fw * logpt_t

    # Padded rows carry target=-1 -> contribute 0 to the sum.
    focal_t = jnp.where(t >= 0, focal_t, 0.0)

    # Plain vector add each step; defer the cross-sublane reduce to the end.
    acc_ref[...] += focal_t

    @pl.when(i == pl.num_programs(0) - 1)
    def _():
        # Single reduction + divide by the (unpadded) batch size, exactly once.
        o_ref[...] = -jnp.sum(acc_ref[...], keepdims=True) * inv_n


def _auto_tile_n(N: int, C: int, target_bytes: int = 4 << 20, max_rows: int = 8192) -> int:
    """Pick the row tile: ~target_bytes per f32 block, multiple of 8, <= padded N."""
    n_pad8 = ((N + 7) // 8) * 8
    rows = target_bytes // max(C * 4, 1)
    rows = max(8, min(int(rows), max_rows, n_pad8))
    return max(8, (rows // 8) * 8)


def focal_loss(x: jax.Array, target: jax.Array, gamma: float = 2.0,
               tile_n: int | None = None) -> jax.Array:
    """x: [N, C] float (f32 or bf16), target: [N] integer. Returns scalar f32."""
    N, C = x.shape

    if tile_n is None:
        tile_n = _auto_tile_n(N, C)
    # Row tile: multiple of 8 sublanes, no larger than the (padded) batch.
    tile_n = max(8, min(int(tile_n), ((N + 7) // 8) * 8))
    tile_n = ((tile_n + 7) // 8) * 8
    n_pad = pl.cdiv(N, tile_n) * tile_n
    num_tiles = n_pad // tile_n

    t = target.astype(jnp.int32).reshape(N, 1)
    if n_pad != N:
        x = jnp.pad(x, ((0, n_pad - N), (0, 0)))
        t = jnp.pad(t, ((0, n_pad - N), (0, 0)), constant_values=-1)

    out = pl.pallas_call(
        functools.partial(_focal_loss_kernel, gamma=float(gamma), inv_n=1.0 / N),
        out_shape=jax.ShapeDtypeStruct((1, 1), jnp.float32),
        grid=(num_tiles,),
        in_specs=[
            pl.BlockSpec((tile_n, C), lambda i: (i, 0)),
            pl.BlockSpec((tile_n, 1), lambda i: (i, 0)),
        ],
        out_specs=pl.BlockSpec((1, 1), lambda i: (0, 0)),
        scratch_shapes=[pltpu.VMEM((tile_n, 1), jnp.float32)],
        compiler_params=pltpu.CompilerParams(
            dimension_semantics=("arbitrary",),
        ),
    )(x, t)
    return out[0, 0]


def _focal_loss_ref(x, target, gamma=2.0):
    # Plain-JAX reference for sanity checking.
    logpt = jax.nn.log_softmax(x.astype(jnp.float32), axis=1)
    pt = jnp.exp(logpt)
    logpt = (1.0 - pt) ** gamma * logpt
    picked = jnp.take_along_axis(logpt, target[:, None].astype(jnp.int32), axis=1)[:, 0]
    return -jnp.mean(picked)


if __name__ == "__main__":
    key = jax.random.PRNGKey(0)
    k1, k2, k3, k4, k5, k6 = jax.random.split(key, 6)

    # Case 1: single row tile (batch 8, 32 classes).
    N, C = 8, 32
    x = jax.random.normal(k1, (N, C), dtype=jnp.float32)
    target = jax.random.randint(k2, (N,), 0, C, dtype=jnp.int32)
    loss = focal_loss(x, target, gamma=2.0)
    jax.block_until_ready(loss)
    ref = _focal_loss_ref(x, target, gamma=2.0)
    assert jnp.allclose(loss, ref, atol=1e-5, rtol=1e-5), (loss, ref)

    # Case 2: multiple row tiles with a padded tail (N not a tile multiple).
    N2, C2 = 20, 32
    x2 = jax.random.normal(k3, (N2, C2), dtype=jnp.float32)
    t2 = jax.random.randint(k4, (N2,), 0, C2, dtype=jnp.int32)
    loss2 = focal_loss(x2, t2, gamma=2.0, tile_n=8)
    jax.block_until_ready(loss2)
    ref2 = _focal_loss_ref(x2, t2, gamma=2.0)
    assert jnp.allclose(loss2, ref2, atol=1e-5, rtol=1e-5), (loss2, ref2)

    # Case 3: bf16 inputs, auto tile size.
    N3, C3 = 64, 16
    x3 = jax.random.normal(k5, (N3, C3), dtype=jnp.bfloat16)
    t3 = jax.random.randint(k6, (N3,), 0, C3, dtype=jnp.int32)
    loss3 = focal_loss(x3, t3, gamma=2.0)
    jax.block_until_ready(loss3)
    ref3 = _focal_loss_ref(x3, t3, gamma=2.0)
    assert jnp.allclose(loss3, ref3, atol=2e-3, rtol=2e-3), (loss3, ref3)

    print("KERNEL_OK")
</pallas_src>

<mosaic_0001>
module attributes {stable_mosaic.version = 11 : i64} {
  func.func @_focal_loss_kernel(%arg0: i32, %arg1: memref<8x32xf32, #tpu.memory_space<vmem>>, %arg2: memref<8x1xi32, #tpu.memory_space<vmem>>, %arg3: memref<1x1xf32, #tpu.memory_space<vmem>>, %arg4: memref<8x1xf32, #tpu.memory_space<vmem>>) attributes {dimension_semantics = [#tpu.dimension_semantics<arbitrary>], iteration_bounds = array<i64: 1>, scalar_prefetch = 0 : i64, scratch_operands = 1 : i64, tpu.core_type = #tpu.core_type<tc>, window_params = [{transform_indices = @transform_0, window_bounds = array<i64: 8, 32>}, {transform_indices = @transform_1, window_bounds = array<i64: 8, 1>}, {pipeline_mode = #tpu.pipeline_mode<synchronous>, transform_indices = @transform_2, window_bounds = array<i64: 1, 1>}]} {
    %c0_i32 = arith.constant 0 : i32
    %0 = arith.cmpi eq, %arg0, %c0_i32 : i32
    %1 = arith.extui %0 : i1 to i32
    %c0_i32_0 = arith.constant 0 : i32
    %2 = arith.cmpi ne, %1, %c0_i32_0 : i32
    scf.if %2 {
      %cst_17 = arith.constant 0.000000e+00 : f32
      %38 = vector.broadcast %cst_17 : f32 to vector<8x1xf32>
      %c0_18 = arith.constant 0 : index
      %c0_19 = arith.constant 0 : index
      %39 = vector.load %arg4[%c0_18, %c0_19] : memref<8x1xf32, #tpu.memory_space<vmem>>, vector<8x1xf32>
      tpu.vector_store %arg4[%c0_18, %c0_19], %38 {strides = array<i32>} : memref<8x1xf32, #tpu.memory_space<vmem>>, vector<8x1xf32>,
    } else {
    }
    %c0 = arith.constant 0 : index
    %c0_1 = arith.constant 0 : index
    %3 = vector.load %arg1[%c0, %c0_1] : memref<8x32xf32, #tpu.memory_space<vmem>>, vector<8x32xf32>
    %c0_2 = arith.constant 0 : index
    %c0_3 = arith.constant 0 : index
    %4 = vector.load %arg2[%c0_2, %c0_3] : memref<8x1xi32, #tpu.memory_space<vmem>>, vector<8x1xi32>
    %cst = arith.constant dense<0xFF800000> : vector<8xf32>
    %5 = vector.multi_reduction <maximumf>, %3, %cst [1] : vector<8x32xf32> to vector<8xf32>
    %6 = vector.shape_cast %5 : vector<8xf32> to vector<8x1xf32>
    %7 = vector.broadcast %6 : vector<8x1xf32> to vector<8x32xf32>
    %8 = arith.subf %3, %7 : vector<8x32xf32>
    %9 = math.exp %8 : vector<8x32xf32>
    %cst_4 = arith.constant dense<0.000000e+00> : vector<8xf32>
    %10 = vector.multi_reduction <add>, %9, %cst_4 [1] : vector<8x32xf32> to vector<8xf32>
    %11 = vector.shape_cast %10 : vector<8xf32> to vector<8x1xf32>
    %12 = math.log %11 : vector<8x1xf32>
    %13 = tpu.iota {dimensions = array<i32: 1>} : vector<8x32xi32>
    %14 = vector.broadcast %4 : vector<8x1xi32> to vector<8x32xi32>
    %15 = arith.cmpi eq, %13, %14 : vector<8x32xi32>
    %cst_5 = arith.constant 0.000000e+00 : f32
    %16 = vector.broadcast %cst_5 : f32 to vector<8x32xf32>
    %17 = arith.select %15, %8, %16 : vector<8x32xi1>, vector<8x32xf32>
    %cst_6 = arith.constant dense<0.000000e+00> : vector<8xf32>
    %18 = vector.multi_reduction <add>, %17, %cst_6 [1] : vector<8x32xf32> to vector<8xf32>
    %19 = vector.shape_cast %18 : vector<8xf32> to vector<8x1xf32>
    %20 = arith.subf %19, %12 : vector<8x1xf32>
    %21 = math.exp %20 : vector<8x1xf32>
    %cst_7 = arith.constant 1.000000e+00 : f32
    %22 = vector.broadcast %cst_7 : f32 to vector<8x1xf32>
    %23 = arith.subf %22, %21 : vector<8x1xf32>
    %cst_8 = arith.constant 1.000000e+00 : f32
    %24 = vector.broadcast %cst_8 : f32 to vector<8x1xf32>
    %25 = arith.mulf %24, %23 : vector<8x1xf32>
    %26 = arith.mulf %25, %23 : vector<8x1xf32>
    %27 = arith.mulf %26, %20 : vector<8x1xf32>
    %c0_i32_9 = arith.constant 0 : i32
    %28 = vector.broadcast %c0_i32_9 : i32 to vector<8x1xi32>
    %29 = arith.cmpi sge, %4, %28 : vector<8x1xi32>
    %cst_10 = arith.constant 0.000000e+00 : f32
    %30 = vector.broadcast %cst_10 : f32 to vector<8x1xf32>
    %31 = arith.select %29, %27, %30 : vector<8x1xi1>, vector<8x1xf32>
    %c0_11 = arith.constant 0 : index
    %c0_12 = arith.constant 0 : index
    %32 = vector.load %arg4[%c0_11, %c0_12] : memref<8x1xf32, #tpu.memory_space<vmem>>, vector<8x1xf32>
    %33 = arith.addf %32, %31 : vector<8x1xf32>
    %c0_13 = arith.constant 0 : index
    %c0_14 = arith.constant 0 : index
    %34 = vector.load %arg4[%c0_13, %c0_14] : memref<8x1xf32, #tpu.memory_space<vmem>>, vector<8x1xf32>
    tpu.vector_store %arg4[%c0_13, %c0_14], %33 {strides = array<i32>} : memref<8x1xf32, #tpu.memory_space<vmem>>, vector<8x1xf32>,
    %c0_i32_15 = arith.constant 0 : i32
    %35 = arith.cmpi eq, %arg0, %c0_i32_15 : i32
    %36 = arith.extui %35 : i1 to i32
    %c0_i32_16 = arith.constant 0 : i32
    %37 = arith.cmpi ne, %36, %c0_i32_16 : i32
    scf.if %37 {
      %c0_17 = arith.constant 0 : index
      %c0_18 = arith.constant 0 : index
      %38 = vector.load %arg4[%c0_17, %c0_18] : memref<8x1xf32, #tpu.memory_space<vmem>>, vector<8x1xf32>
      %39 = vector.shape_cast %38 : vector<8x1xf32> to vector<1x8x1xf32>
      %cst_19 = arith.constant dense<0.000000e+00> : vector<1xf32>
      %40 = vector.multi_reduction <add>, %39, %cst_19 [1, 2] : vector<1x8x1xf32> to vector<1xf32>
      %41 = vector.shape_cast %40 : vector<1xf32> to vector<1x1x1xf32>
      %42 = vector.extract %41[0, 0, 0] : f32 from vector<1x1x1xf32>
      %43 = vector.broadcast %42 : f32 to vector<1x1xf32>
      %cst_20 = arith.constant 0.000000e+00 : f32
      %44 = vector.broadcast %cst_20 : f32 to vector<1x1xf32>
      %45 = arith.subf %44, %43 : vector<1x1xf32>
      %cst_21 = arith.constant 1.250000e-01 : f32
      %46 = vector.broadcast %cst_21 : f32 to vector<1x1xf32>
      %47 = arith.mulf %45, %46 : vector<1x1xf32>
      %c0_22 = arith.constant 0 : index
      %c0_23 = arith.constant 0 : index
      %48 = vector.load %arg3[%c0_22, %c0_23] : memref<1x1xf32, #tpu.memory_space<vmem>>, vector<1x1xf32>
      tpu.vector_store %arg3[%c0_22, %c0_23], %47 {strides = array<i32>} : memref<1x1xf32, #tpu.memory_space<vmem>>, vector<1x1xf32>,
    } else {
    }
    return
  }
  func.func @transform_0(%arg0: i32) -> (i32, i32) {
    %c0_i32 = arith.constant 0 : i32
    %c0_i32_0 = arith.constant 0 : i32
    return %arg0, %c0_i32 : i32, i32
  }
  func.func @transform_1(%arg0: i32) -> (i32, i32) {
    %c0_i32 = arith.constant 0 : i32
    %c0_i32_0 = arith.constant 0 : i32
    return %arg0, %c0_i32 : i32, i32
  }
  func.func @transform_2(%arg0: i32) -> (i32, i32) {
    %c0_i32 = arith.constant 0 : i32
    %c0_i32_0 = arith.constant 0 : i32
    %c0_i32_1 = arith.constant 0 : i32
    return %c0_i32, %c0_i32_0 : i32, i32
  }
}

</mosaic_0001>

<llo_original>
// kernel: tpu_custom_call.1
$region0: #{tpu_custom_call.1}
  #allocation0 [shape = 'u32[]', space=smem, size = 0x4, offset = 0x4, fixed_abs, tag = 'smem constant byte address 0x4 - core index']
  #allocation1 [shape = 'u32[72,128]{1,0:T(1,128)}', space=vmem, size = 0x9000, scoped, tag = 'internal scratch']
  #allocation2 [shape = 'f32[8,1]{1,0:T(8,128)}', space=vmem, size = 0x1000, scoped, tag = 'scratch operand']
  %s0 = inlined_call_operand.vmem [shape: f32[8,32], index: 0, kind: input, shape index: {}]
  %s1 = inlined_call_operand.vmem [shape: s32[8,1], index: 1, kind: input, shape index: {}]
  %s2 = inlined_call_operand.hbm [shape: f32[1,1], index: 2, kind: output, shape index: {}]
  %s3 = sld [smem:[#allocation0]]
  $region26: #{tpu_custom_call.1} parent=0
    _
  %s5 = ssub.s32 1, %s3
  %s6 = scalar_select 0, %s5, %s3
  $region1: #{tpu_custom_call.1} parent=0
    #allocation3 [shape = 'u8[512]{0}', space=vmem, size = 0x400, scoped, tag = 'output window, operand 0, single buffered']
    #allocation4 [shape = 's32[1]{0}', space=sflag, size = 0x4, scoped, tag = 'scoped memory for tpu_custom_call.1']
    %7 = vsyncpa [#allocation4], 0
    // Predicated region
    $region2: #{tpu_custom_call.1} parent=1 // pred_check
      _
    $region3: #{tpu_custom_call.1} parent=1 // pred_check_branch
      %9 = sbr.rel (0) target = $region5
    $region4: #{tpu_custom_call.1} parent=1 // pred_region
      _
    $region5: #{tpu_custom_call.1} parent=1 // pred_fallthru
      _
    // Predicated region
    $region6: #{tpu_custom_call.1} parent=1 // pred_check
      _
    $region7: #{tpu_custom_call.1} parent=1 // pred_check_branch
      %11 = sbr.rel (0) target = $region9
    $region8: #{tpu_custom_call.1} parent=1 // pred_region
      _
    $region9: #{tpu_custom_call.1} parent=1 // pred_fallthru
      _
    %p12 = scmp.eq.s32.totalorder 0, 0
    // Predicated region
    $region10: #{tpu_custom_call.1} parent=1 // pred_check
      %p13 = pneg %p12
    $region11: #{tpu_custom_call.1} parent=1 // pred_check_branch
      %15 = sbr.rel (%p13) target = $region13
    $region12: #{tpu_custom_call.1} parent=1 // pred_region
      %vm16 = vcmask 7168
      %17 = vst.msk [vmem:[#allocation2] sm:$0xff] %vm16, 0.0
    $region13: #{tpu_custom_call.1} parent=1 // pred_fallthru
      _
    %v18 = vld [vmem:[%s0] sm:$0xff]
    %v19 = vld [vmem:[%s1] sm:$0xff]
    %vm20 = vcmask 261120
    %v21 = vsel %vm20, %v18, -inf
    %22 = vmax.xlane.f32.xlu0 %v21
    %v23 = vpop.xlane.xlu0 %22
    %v24 = vsub.f32 %v18, %v23
    %v25 = vmul.f32 %v24, 1.442695
    %v26 = vpow.pop %v25
    %v27 = vsel %vm20, %v26, 0.0
    %28 = vadd.xlane.f32.xlu0 %v27
    %v29 = vpop.xlane.xlu0 %28
    %v30 = vlog2.pop %v29
    %v31 = vmul.f32 %v30, 0.6931472
    %v32 = vlaneseq
    %v33 = vand.u32 %v32, 127
    %34 = vset.pattern.permute.xlu0 0
    %35 = vperm.xlu0 %34, %v19
    %v36 = vpop.permute.xlu0 %35
    %vm37 = vcmp.eq.s32.totalorder %v33, %v36
    %v38 = vsel %vm37, %v24, 0.0
    %v39 = vsel %vm20, %v38, 0.0
    %40 = vadd.xlane.f32.xlu0 %v39
    %v41 = vpop.xlane.xlu0 %40
    %v42 = vsub.f32 %v41, %v31
    %v43 = vmul.f32 %v42, 1.442695
    %v44 = vpow.pop %v43
    %v45 = vsub.f32 1.0, %v44
    %v46 = vmul.f32 %v45, %v45
    %v47 = vmul.f32 %v46, %v42
    %vm48 = vcmp.ge.s32.totalorder %v19, 0
    %v49 = vsel %vm48, %v47, 0.0
    %v50 = vld [vmem:[#allocation2] sm:$0xff]
    %v51 = vadd.f32 %v50, %v49
    %vm52 = vcmask 7168
    %53 = vst.msk [vmem:[#allocation2] sm:$0xff] %vm52, %v51
    // Predicated region
    $region14: #{tpu_custom_call.1} parent=1 // pred_check
      %p54 = pneg %p12
    $region15: #{tpu_custom_call.1} parent=1 // pred_check_branch
      %56 = sbr.rel (%p54) target = $region17
    $region16: #{tpu_custom_call.1} parent=1 // pred_region
      %v57 = vld [vmem:[#allocation2] sm:$0xff]
      %v58 = vsel %vm52, %v57, 0.0
      %59 = vadd.xlane.f32.xlu0 %v58
      %v60 = vpop.xlane.xlu0 %59
      %v61 = vrot.slane %v60, 4
      %v62 = vadd.f32 %v60, %v61
      %v63 = vrot.slane %v62, 2
      %v64 = vadd.f32 %v62, %v63
      %v65 = vrot.slane %v64, 1
      %v66 = vadd.f32 %v64, %v65
      %s67 = vtos %v66
      %v68 = vstv %s67
      %v69 = vsub.f32 0.0, %v68
      %v70 = vmul.f32 %v69, 0.125
      %vm71 = vcmask 0
      %72 = vst.msk [vmem:[#allocation3] sm:$0x1] %vm71, %v70
    $region17: #{tpu_custom_call.1} parent=1 // pred_fallthru
      _
    // Predicated region
    $region18: #{tpu_custom_call.1} parent=1 // pred_check
      _
    $region19: #{tpu_custom_call.1} parent=1 // pred_check_branch
      %74 = sbr.rel (0) target = $region21
    $region20: #{tpu_custom_call.1} parent=1 // pred_region
      %76 = vsyncadd [#allocation4], 0
      %s78 = sshll.u32 [#allocation3], 4
      %s79 = int_to_ptr.vmem [resolvable:$true] %s78
      %s80 = sshll.u32 %s2, 4
      %s81 = int_to_ptr.hbm [resolvable:$true] %s80
      %83 = dma.vmem_to_hbm [thread:$0]  %s79, 16, %s81, [#allocation4]
    $region21: #{tpu_custom_call.1} parent=1 // pred_fallthru
      _
    // Predicated region
    $region22: #{tpu_custom_call.1} parent=1 // pred_check
      _
    $region23: #{tpu_custom_call.1} parent=1 // pred_check_branch
      %85 = sbr.rel (0) target = $region25
    $region24: #{tpu_custom_call.1} parent=1 // pred_region
      %87 = dma.done [#allocation4], 16
    $region25: #{tpu_custom_call.1} parent=1 // pred_fallthru
      _
    %88 = vsyncpa [#allocation4], 1

</llo_original>
